<compile_context>
chip_gen: v5e
topology: v5e:2x2
jax: 0.10.0
libtpu: 0.0.40
codegen_flags: <defaults>
</compile_context>

<pallas_src>
import functools

import jax
import jax.numpy as jnp
from jax import lax
from jax.experimental import pallas as pl
from jax.experimental.pallas import tpu as pltpu

_BF16 = jnp.bfloat16
_MIB = 1 << 20


def _round_up(x, m):
    return (x + m - 1) // m * m


def _cdiv(a, b):
    return -(-a // b)


def _vmem_capacity_bytes():
    # Conservative fallback: assume the smallest per-TensorCore VMEM (v7x, 64 MiB).
    cap = 64 * _MIB
    try:
        info = pltpu.get_tpu_info()
        cap = int(getattr(info, "vmem_capacity_bytes", cap))
    except Exception:
        pass
    return cap


_VMEM_CAP = _vmem_capacity_bytes()
# Scoped-VMEM limit: ~48 MiB on v7x (64 MiB physical), up to 112 MiB on v5e/v6e (128 MiB).
_VMEM_LIMIT = int(min(max(_VMEM_CAP - 16 * _MIB, 32 * _MIB), 112 * _MIB))
_TILE_BUDGET = int(0.80 * _VMEM_LIMIT)   # working-set budget for pass-2 buffers


def _multispike(x):
    # Multispike forward: floor(clamp(4*x, 0, 4) + 0.5) / 4
    return jnp.floor(jnp.clip(4.0 * x, 0.0, 4.0) + 0.5) * 0.25


# ------------------------------- tiling plan ----------------------------------------
def _plan(N, out_feat, tile_rows=None, tile_k=None):
    c_pad = _round_up(out_feat, 128)
    # Bigger default tiles when VMEM allows (v5e/v6e); 2048 is the safe v7x choice.
    default_tile = 4096 if _TILE_BUDGET >= 80 * _MIB else 2048
    tm = _round_up(min(tile_rows or default_tile, N), 128)
    tk = _round_up(min(tile_k or default_tile, N), 128)

    def pass2_bytes(tm_, tk_, emb_rows, adj_bufs):
        return (adj_bufs * tm_ * tk_ * 2        # adj tiles (bf16)
                + 2 * emb_rows * c_pad * 2      # emb buffers (bf16)
                + 2 * tm_ * c_pad * 2           # x output (bf16, double-buffered)
                + tm_ * c_pad * 4)              # f32 accumulator scratch

    # Shrink tiles until the minimum-footprint config (streamed emb, 2 adj buffers) fits.
    while pass2_bytes(tm, tk, tk, 2) > _TILE_BUDGET and max(tm, tk) > 128:
        if tk >= tm:
            tk = max(tk // 2, 128)
        else:
            tm = max(tm // 2, 128)

    n_k_tiles = _cdiv(N, tk)
    n_k = n_k_tiles * tk
    n_row_tiles = _cdiv(N, tm)
    n_cores = 2 if n_row_tiles >= 2 else 1           # v7x megacore split for pass 3
    n_row_tiles = _round_up(n_row_tiles, n_cores)
    n_m = n_row_tiles * tm

    # Prefer: resident emb (DMA'd once) and 3-deep adj buffering, in that order.
    emb_resident, adj_bufs = False, 2
    for res, bufs in ((True, 3), (True, 2), (False, 3), (False, 2)):
        rows = n_k if res else tk
        if pass2_bytes(tm, tk, rows, bufs) <= _TILE_BUDGET:
            emb_resident, adj_bufs = res, bufs
            break

    return dict(c_pad=c_pad, tm=tm, tk=tk, n_m=n_m, n_k=n_k,
                n_row_tiles=n_row_tiles, n_k_tiles=n_k_tiles, n_cores=n_cores,
                emb_resident=emb_resident, adj_bufs=adj_bufs)


def prepare_adj(adj, *, out_feat, tile_rows=None, tile_k=None):
    """One-time pad + cast of the (static) adjacency to the padded bf16 layout pass 2 reads.

    Do this ONCE outside the per-iteration path: the pad/cast is a full extra read/write of
    the dominant HBM stream, so hoisting it cuts per-forward adj traffic ~3x.
    """
    # TODO(synk): adj is a dense stand-in for torch.spmm's sparse matrix; true sparsity
    # would need a CSR gather kernel (scalar-prefetched row pointers).
    N = adj.shape[0]
    p = _plan(N, out_feat, tile_rows, tile_k)
    if adj.shape == (p["n_m"], p["n_k"]) and adj.dtype == _BF16:
        return adj
    return jnp.zeros((p["n_m"], p["n_k"]), _BF16).at[:N, :N].set(adj.astype(_BF16))


# --------------- kernel 1: emb = feat @ weight --------------------------------------
def _embed_kernel(feat_ref, w_ref, emb_f32_ref, emb_bf16_ref):
    e = jnp.dot(feat_ref[...], w_ref[...], preferred_element_type=jnp.float32)
    emb_f32_ref[...] = e
    emb_bf16_ref[...] = e.astype(_BF16)


# --------------- kernel 2: x = multispike(adj @ emb) --------------------------------
def _aggregate_kernel(adj_ref, emb_ref, x_ref, acc_ref, *, tk, emb_resident):
    k = pl.program_id(1)

    @pl.when(k == 0)
    def _():
        acc_ref[...] = jnp.zeros_like(acc_ref)

    if emb_resident:
        off = pl.multiple_of(k * tk, 128)
        emb_blk = emb_ref[pl.ds(off, tk), :]      # emb DMA'd once; sliced per K step
    else:
        emb_blk = emb_ref[...]
    acc_ref[...] += jnp.dot(adj_ref[...], emb_blk, preferred_element_type=jnp.float32)

    @pl.when(k == pl.num_programs(1) - 1)
    def _():
        x_ref[...] = _multispike(acc_ref[...]).astype(x_ref.dtype)


# --------------- kernel 3: per-core kv partials: kvp[c] = sum_rows k^T v ------------
def _kv_kernel(x_ref, wkv_ref, kvp_ref, *, c_pad):
    j = pl.program_id(1)

    @pl.when(j == 0)
    def _():
        kvp_ref[...] = jnp.zeros_like(kvp_ref)

    # x is already a multispike output, so head_lif (multispike again) is a no-op.
    kv_act = _multispike(jnp.dot(x_ref[...], wkv_ref[...],
                                 preferred_element_type=jnp.float32))
    k = kv_act[:, :c_pad].astype(_BF16)     # exact: values in {0,.25,.5,.75,1}
    v = kv_act[:, c_pad:].astype(_BF16)
    kvp_ref[...] += lax.dot_general(k, v, (((0,), (0,)), ((), ())),
                                    preferred_element_type=jnp.float32)[None, :, :]


# --------------- kernel 4: out = x + ((q @ kv) * 0.25) @ Wp^T -----------------------
def _attend_kernel(x_ref, kvp_ref, mask_ref, wq_ref, wp_ref, out_ref):
    x = x_ref[...]
    # q recomputed per row tile from resident Wq (saves the q HBM round trip).
    q = _multispike(jnp.dot(x, wq_ref[...], preferred_element_type=jnp.float32))
    # Combine per-core kv partials, apply block-diagonal head mask; kv stays f32.
    kv = kvp_ref[0]
    for c in range(1, kvp_ref.shape[0]):
        kv = kv + kvp_ref[c]
    kv = kv * mask_ref[...]
    attn = jnp.dot(q, kv, preferred_element_type=jnp.float32) * 0.25
    enh = jnp.dot(attn.astype(_BF16), wp_ref[...], preferred_element_type=jnp.float32)
    out_ref[...] = x.astype(jnp.float32) + enh


# --------------- wrapper -------------------------------------------------------------
def quantized_encoder(feat, adj, weight, wq, wk, wv, wp, *, num_heads=8,
                      tile_rows=None, tile_k=None):
    """QuantizedEncoder.forward.

    feat [N, in_feat] f32, adj either the raw [N, N] f32 adjacency or (preferred) the
    padded bf16 layout from prepare_adj(); weight [in_feat, out_feat]; wq/wk/wv/wp are
    torch-Linear [out, out] weights. Returns (feat_embedding [N, out_feat], out [N, out_feat]).
    """
    N, in_feat = feat.shape
    out_feat = weight.shape[1]
    assert out_feat % num_heads == 0, "out_feat must be divisible by num_heads"
    head_dim = out_feat // num_heads

    p = _plan(N, out_feat, tile_rows, tile_k)
    c_pad, tm, tk = p["c_pad"], p["tm"], p["tk"]
    n_m, n_k = p["n_m"], p["n_k"]
    n_row_tiles, n_k_tiles = p["n_row_tiles"], p["n_k_tiles"]
    n_cores = p["n_cores"]
    half = n_row_tiles // n_cores
    f_pad = _round_up(in_feat, 128)

    # adj: accept the pre-padded bf16 layout from prepare_adj() (keeps the dominant HBM
    # stream off the per-call path); otherwise pad/cast here as a fallback.
    if adj.shape == (n_m, n_k) and adj.dtype == _BF16:
        adj_p = adj
    else:
        assert adj.shape == (N, N), "adj must be [N, N] or the prepare_adj() layout"
        adj_p = jnp.zeros((n_m, n_k), _BF16).at[:N, :N].set(adj.astype(_BF16))

    # Small operands: pad/cast per call (cheap relative to adj).
    feat_p = jnp.zeros((n_k, f_pad), _BF16).at[:N, :in_feat].set(feat.astype(_BF16))
    w_p = jnp.zeros((f_pad, c_pad), _BF16).at[:in_feat, :out_feat].set(weight.astype(_BF16))
    wkv_p = jnp.zeros((c_pad, 2 * c_pad), _BF16)
    wkv_p = wkv_p.at[:out_feat, 0 * c_pad:0 * c_pad + out_feat].set(wk.T.astype(_BF16))
    wkv_p = wkv_p.at[:out_feat, 1 * c_pad:1 * c_pad + out_feat].set(wv.T.astype(_BF16))
    wq_p = jnp.zeros((c_pad, c_pad), _BF16).at[:out_feat, :out_feat].set(wq.T.astype(_BF16))
    wp_p = jnp.zeros((c_pad, c_pad), _BF16).at[:out_feat, :out_feat].set(wp.T.astype(_BF16))

    # Block-diagonal head mask as a tiny constant input (resident in VMEM).
    col = jnp.arange(c_pad)
    head_id = col // head_dim
    valid = col < out_feat
    head_mask = ((head_id[:, None] == head_id[None, :])
                 & valid[:, None] & valid[None, :]).astype(jnp.float32)

    def cparams(sem):
        return pltpu.CompilerParams(dimension_semantics=sem,
                                    vmem_limit_bytes=_VMEM_LIMIT)

    # ---- 1. emb = feat @ weight (computed exactly once) ----------------------------
    emb_f32, emb_bf16 = pl.pallas_call(
        _embed_kernel,
        out_shape=(jax.ShapeDtypeStruct((n_k, c_pad), jnp.float32),
                   jax.ShapeDtypeStruct((n_k, c_pad), _BF16)),
        grid_spec=pltpu.PrefetchScalarGridSpec(
            num_scalar_prefetch=0, grid=(n_k_tiles,),
            in_specs=[pl.BlockSpec((tk, f_pad), lambda i: (i, 0)),
                      pl.BlockSpec((f_pad, c_pad), lambda i: (0, 0))],
            out_specs=(pl.BlockSpec((tk, c_pad), lambda i: (i, 0)),
                       pl.BlockSpec((tk, c_pad), lambda i: (i, 0)))),
        compiler_params=cparams(("parallel",)),
    )(feat_p, w_p)

    # ---- 2. x = multispike(adj @ emb): rows parallel, K reduction last -------------
    if p["emb_resident"]:
        emb_spec = pl.BlockSpec((n_k, c_pad), lambda i, k: (0, 0))     # DMA'd once
        emb_bytes = 2 * n_k * c_pad
    else:
        emb_spec = pl.BlockSpec((tk, c_pad), lambda i, k: (k, 0))      # re-streamed
        emb_bytes = 2 * n_k * c_pad * n_row_tiles
    adj_spec = pl.BlockSpec((tm, tk), lambda i, k: (i, k),
                            pipeline_mode=pl.Buffered(p["adj_bufs"]))
    x_bf16 = pl.pallas_call(
        functools.partial(_aggregate_kernel, tk=tk, emb_resident=p["emb_resident"]),
        out_shape=jax.ShapeDtypeStruct((n_m, c_pad), _BF16),
        grid_spec=pltpu.PrefetchScalarGridSpec(
            num_scalar_prefetch=0, grid=(n_row_tiles, n_k_tiles),
            in_specs=[adj_spec, emb_spec],
            out_specs=pl.BlockSpec((tm, c_pad), lambda i, k: (i, 0)),
            scratch_shapes=[pltpu.VMEM((tm, c_pad), jnp.float32)]),
        compiler_params=cparams(("parallel", "arbitrary")),
        cost_estimate=pl.CostEstimate(
            flops=2 * n_m * n_k * c_pad,
            transcendentals=0,
            bytes_accessed=2 * n_m * n_k + emb_bytes + 2 * n_m * c_pad),
    )(adj_p, emb_bf16)

    # ---- 3. per-core kv partials (row-tile reduction; core axis is truly parallel) --
    kv_partial = pl.pallas_call(
        functools.partial(_kv_kernel, c_pad=c_pad),
        out_shape=jax.ShapeDtypeStruct((n_cores, c_pad, c_pad), jnp.float32),
        grid_spec=pltpu.PrefetchScalarGridSpec(
            num_scalar_prefetch=0, grid=(n_cores, half),
            in_specs=[pl.BlockSpec((tm, c_pad), lambda c, j: (c * half + j, 0)),
                      pl.BlockSpec((c_pad, 2 * c_pad), lambda c, j: (0, 0))],
            out_specs=pl.BlockSpec((1, c_pad, c_pad), lambda c, j: (c, 0, 0))),
        compiler_params=cparams(("parallel", "arbitrary")),
    )(x_bf16, wkv_p)

    # ---- 4. out = x + proj(q @ kv * 0.25): rows parallel, q recomputed in-kernel ----
    out_f32 = pl.pallas_call(
        _attend_kernel,
        out_shape=jax.ShapeDtypeStruct((n_m, c_pad), jnp.float32),
        grid_spec=pltpu.PrefetchScalarGridSpec(
            num_scalar_prefetch=0, grid=(n_row_tiles,),
            in_specs=[pl.BlockSpec((tm, c_pad), lambda i: (i, 0)),                 # x
                      pl.BlockSpec((n_cores, c_pad, c_pad), lambda i: (0, 0, 0)),  # kv partials
                      pl.BlockSpec((c_pad, c_pad), lambda i: (0, 0)),              # head mask
                      pl.BlockSpec((c_pad, c_pad), lambda i: (0, 0)),              # Wq^T
                      pl.BlockSpec((c_pad, c_pad), lambda i: (0, 0))],             # Wp^T
            out_specs=pl.BlockSpec((tm, c_pad), lambda i: (i, 0))),
        compiler_params=cparams(("parallel",)),
    )(x_bf16, kv_partial, head_mask, wq_p, wp_p)

    return emb_f32[:N, :out_feat], out_f32[:N, :out_feat]


# --------------- pure-JAX reference (mirrors kernel mixed-precision policy) ----------
def _reference(feat, adj, weight, wq, wk, wv, wp, num_heads):
    def mm(a, b):
        return jnp.dot(a.astype(_BF16), b.astype(_BF16),
                       preferred_element_type=jnp.float32)

    emb = mm(feat, weight)                      # feat_embedding
    x = _multispike(mm(adj, emb))               # spike_act(spmm(adj, emb))
    xh = _multispike(x)                         # head_lif (idempotent -> equals x)
    q = _multispike(mm(xh, wq.T))
    k = _multispike(mm(xh, wk.T))
    v = _multispike(mm(xh, wv.T))
    N, C = q.shape
    D = C // num_heads
    qh = q.reshape(N, num_heads, D).transpose(1, 0, 2)
    kh = k.reshape(N, num_heads, D).transpose(1, 0, 2)
    vh = v.reshape(N, num_heads, D).transpose(1, 0, 2)
    kv = jnp.einsum('hnd,hne->hde', kh.astype(_BF16), vh.astype(_BF16),
                    preferred_element_type=jnp.float32)
    attn = jnp.einsum('hnd,hde->hne', qh, kv,
                      preferred_element_type=jnp.float32) * 0.25
    attn = attn.transpose(1, 0, 2).reshape(N, C)
    enh = mm(attn, wp.T)
    return emb, x + enh


if __name__ == "__main__":
    N, in_feat, out_feat, num_heads = 128, 64, 32, 8

    key = jax.random.PRNGKey(0)
    k0, k1, k2, k3, k4, k5, k6 = jax.random.split(key, 7)

    feat = jax.random.normal(k0, (N, in_feat), dtype=jnp.float32)
    # Dense row-normalized "adjacency" (stands in for the sparse adj in torch.spmm).
    adj_raw = jax.random.uniform(k1, (N, N), dtype=jnp.float32)
    adj = adj_raw / jnp.sum(adj_raw, axis=1, keepdims=True)

    bound_w = (6.0 / (in_feat + out_feat)) ** 0.5
    weight = jax.random.uniform(k2, (in_feat, out_feat), jnp.float32, -bound_w, bound_w)
    bound_l = 1.0 / (out_feat ** 0.5)
    wq = jax.random.uniform(k3, (out_feat, out_feat), jnp.float32, -bound_l, bound_l)
    wk = jax.random.uniform(k4, (out_feat, out_feat), jnp.float32, -bound_l, bound_l)
    wv = jax.random.uniform(k5, (out_feat, out_feat), jnp.float32, -bound_l, bound_l)
    wp = jax.random.uniform(k6, (out_feat, out_feat), jnp.float32, -bound_l, bound_l)

    # One-time preprocessing of the (static) adjacency: pad + cast to bf16 outside the
    # per-call path so pass 2 reads adj exactly once per forward.
    adj_prepped = prepare_adj(adj, out_feat=out_feat)

    emb, out = quantized_encoder(feat, adj_prepped, weight, wq, wk, wv, wp,
                                 num_heads=num_heads)
    jax.block_until_ready((emb, out))

    emb_ref, out_ref = _reference(feat, adj, weight, wq, wk, wv, wp, num_heads)
    assert jnp.allclose(emb, emb_ref, atol=1e-3, rtol=1e-3), "feat_embedding mismatch"
    assert jnp.allclose(out, out_ref, atol=5e-3, rtol=5e-3), "output mismatch"

    # Sanity check: the bf16-operand embedding stays close to full-f32 module semantics.
    assert jnp.allclose(emb, feat @ weight, atol=0.1, rtol=0.1), "embedding drifted from f32"

    print("KERNEL_OK")
</pallas_src>

<mosaic_0001>
module attributes {stable_mosaic.version = 11 : i64} {
  func.func @_embed_kernel(%arg0: i32, %arg1: memref<128x128xbf16, #tpu.memory_space<vmem>>, %arg2: memref<128x128xbf16, #tpu.memory_space<vmem>>, %arg3: memref<128x128xf32, #tpu.memory_space<vmem>>, %arg4: memref<128x128xbf16, #tpu.memory_space<vmem>>) attributes {dimension_semantics = [#tpu.dimension_semantics<parallel>], iteration_bounds = array<i64: 1>, scalar_prefetch = 0 : i64, scratch_operands = 0 : i64, tpu.core_type = #tpu.core_type<tc>, window_params = [{transform_indices = @transform_0, window_bounds = array<i64: 128, 128>}, {pipeline_mode = #tpu.pipeline_mode<synchronous>, transform_indices = @transform_1, window_bounds = array<i64: 128, 128>}, {transform_indices = @transform_2, window_bounds = array<i64: 128, 128>}, {transform_indices = @transform_3, window_bounds = array<i64: 128, 128>}]} {
    %c0 = arith.constant 0 : index
    %c0_0 = arith.constant 0 : index
    %0 = vector.load %arg1[%c0, %c0_0] : memref<128x128xbf16, #tpu.memory_space<vmem>>, vector<128x128xbf16>
    %c0_1 = arith.constant 0 : index
    %c0_2 = arith.constant 0 : index
    %1 = vector.load %arg2[%c0_1, %c0_2] : memref<128x128xbf16, #tpu.memory_space<vmem>>, vector<128x128xbf16>
    %cst = arith.constant dense<0.000000e+00> : vector<128x128xf32>
    %2 = tpu.matmul %0, %1, %cst {dimension_numbers = #tpu.dot_dimension_numbers<[1], [0], [0], [1], [0, 0, 1, 1], [], []>} : vector<128x128xbf16>, vector<128x128xbf16>, vector<128x128xf32> -> vector<128x128xf32>
    %c0_3 = arith.constant 0 : index
    %c0_4 = arith.constant 0 : index
    %3 = vector.load %arg3[%c0_3, %c0_4] : memref<128x128xf32, #tpu.memory_space<vmem>>, vector<128x128xf32>
    tpu.vector_store %arg3[%c0_3, %c0_4], %2 {strides = array<i32>} : memref<128x128xf32, #tpu.memory_space<vmem>>, vector<128x128xf32>,
    %4 = arith.truncf %2 : vector<128x128xf32> to vector<128x128xbf16>
    %c0_5 = arith.constant 0 : index
    %c0_6 = arith.constant 0 : index
    %5 = vector.load %arg4[%c0_5, %c0_6] : memref<128x128xbf16, #tpu.memory_space<vmem>>, vector<128x128xbf16>
    tpu.vector_store %arg4[%c0_5, %c0_6], %4 {strides = array<i32>} : memref<128x128xbf16, #tpu.memory_space<vmem>>, vector<128x128xbf16>,
    return
  }
  func.func @transform_0(%arg0: i32) -> (i32, i32) {
    %c0_i32 = arith.constant 0 : i32
    %c0_i32_0 = arith.constant 0 : i32
    return %arg0, %c0_i32 : i32, i32
  }
  func.func @transform_1(%arg0: i32) -> (i32, i32) {
    %c0_i32 = arith.constant 0 : i32
    %c0_i32_0 = arith.constant 0 : i32
    %c0_i32_1 = arith.constant 0 : i32
    return %c0_i32, %c0_i32_0 : i32, i32
  }
  func.func @transform_2(%arg0: i32) -> (i32, i32) {
    %c0_i32 = arith.constant 0 : i32
    %c0_i32_0 = arith.constant 0 : i32
    return %arg0, %c0_i32 : i32, i32
  }
  func.func @transform_3(%arg0: i32) -> (i32, i32) {
    %c0_i32 = arith.constant 0 : i32
    %c0_i32_0 = arith.constant 0 : i32
    return %arg0, %c0_i32 : i32, i32
  }
}

</mosaic_0001>

<llo_original>
// kernel: tpu_custom_call.1
$region0: #{tpu_custom_call.1}
  #allocation0 [shape = 'u32[]', space=smem, size = 0x4, offset = 0x4, fixed_abs, tag = 'smem constant byte address 0x4 - core index']
  #allocation1 [shape = 'u32[72,128]{1,0:T(1,128)}', space=vmem, size = 0x9000, scoped, tag = 'internal scratch']
  %s0 = inlined_call_operand.hbm [shape: bf16[128,128], index: 0, kind: input, shape index: {}]
  %s1 = inlined_call_operand.hbm [shape: bf16[128,128], index: 1, kind: input, shape index: {}]
  %s2 = inlined_call_operand.hbm [shape: f32[128,128], index: 2, kind: output, shape index: {0}]
  %s3 = inlined_call_operand.hbm [shape: bf16[128,128], index: 3, kind: output, shape index: {1}]
  %4 = xla_tuple %s2, %s3
  %s5 = sld [smem:[#allocation0]]
  $region34: #{tpu_custom_call.1} parent=0
    _
  %s7 = ssub.s32 1, %s5
  %s8 = scalar_select 0, %s7, %s5
  $region1: #{tpu_custom_call.1} parent=0
    #allocation2 [shape = 'u8[32768]{0}', space=vmem, size = 0x8000, scoped, tag = 'input window, operand 0, single buffered']
    #allocation3 [shape = 's32[1]{0}', space=sflag, size = 0x4, scoped, tag = 'scoped memory for tpu_custom_call.1']
    #allocation4 [shape = 's32[1]{0}', space=sflag, size = 0x4, scoped, tag = 'scoped memory for tpu_custom_call.1']
    #allocation5 [shape = 'u8[32768]{0}', space=vmem, size = 0x8000, scoped, tag = 'input window, operand 1, single buffered']
    #allocation6 [shape = 's32[1]{0}', space=sflag, size = 0x4, scoped, tag = 'scoped memory for tpu_custom_call.1']
    #allocation7 [shape = 'u8[65536]{0}', space=vmem, size = 0x10000, scoped, tag = 'output window, operand 0, single buffered']
    #allocation8 [shape = 'u8[32768]{0}', space=vmem, size = 0x8000, scoped, tag = 'output window, operand 1, single buffered']
    #allocation9 [shape = 's32[1]{0}', space=sflag, size = 0x4, scoped, tag = 'scoped memory for tpu_custom_call.1']
    %9 = vsyncpa [#allocation3], 0
    %10 = vsyncpa [#allocation6], 0
    %11 = vsyncpa [#allocation4], 0
    %12 = vsyncpa [#allocation9], 0
    // Predicated region
    $region2: #{tpu_custom_call.1} parent=1 // pred_check
      _
    $region3: #{tpu_custom_call.1} parent=1 // pred_check_branch
      %14 = sbr.rel (0) target = $region5
    $region4: #{tpu_custom_call.1} parent=1 // pred_region
      %16 = vsyncadd [#allocation3], 0
      %s17 = sshll.u32 %s0, 4
      %s18 = int_to_ptr.hbm [resolvable:$true] %s17
      %s19 = sshll.u32 [#allocation2], 4
      %s20 = int_to_ptr.vmem [resolvable:$true] %s19
      %25 = dma.hbm_to_vmem [thread:$0]  %s18, 1024, %s20, [#allocation3], 64, 64, 4
    $region5: #{tpu_custom_call.1} parent=1 // pred_fallthru
      _
    // Predicated region
    $region6: #{tpu_custom_call.1} parent=1 // pred_check
      _
    $region7: #{tpu_custom_call.1} parent=1 // pred_check_branch
      %27 = sbr.rel (0) target = $region9
    $region8: #{tpu_custom_call.1} parent=1 // pred_region
      %29 = vsyncadd [#allocation6], 0
      %s30 = sshll.u32 %s1, 4
      %s31 = int_to_ptr.hbm [resolvable:$true] %s30
      %s32 = sshll.u32 [#allocation5], 4
      %s33 = int_to_ptr.vmem [resolvable:$true] %s32
      %38 = dma.hbm_to_vmem [thread:$0]  %s31, 1024, %s33, [#allocation6], 64, 64, 4
    $region9: #{tpu_custom_call.1} parent=1 // pred_fallthru
      _
    // Predicated region
    $region10: #{tpu_custom_call.1} parent=1 // pred_check
      _
    $region11: #{tpu_custom_call.1} parent=1 // pred_check_branch
      %40 = sbr.rel (0) target = $region13
    $region12: #{tpu_custom_call.1} parent=1 // pred_region
      %42 = dma.done [#allocation3], 1024
    $region13: #{tpu_custom_call.1} parent=1 // pred_fallthru
      _
    // Predicated region
    $region14: #{tpu_custom_call.1} parent=1 // pred_check
      _
    $region15: #{tpu_custom_call.1} parent=1 // pred_check_branch
      %44 = sbr.rel (0) target = $region17
    $region16: #{tpu_custom_call.1} parent=1 // pred_region
      %46 = dma.done [#allocation6], 1024
    $region17: #{tpu_custom_call.1} parent=1 // pred_fallthru
      _
    %v47 = vld [vmem:[#allocation2] sm:$0xf]
    %v48 = vld [vmem:[#allocation2 + $0x4] sm:$0xf]
    %v49 = vld [vmem:[#allocation2 + $0x8] sm:$0xf]
    %v50 = vld [vmem:[#allocation2 + $0xc] sm:$0xf]
    %v51 = vld [vmem:[#allocation2 + $0x10] sm:$0xf]
    %v52 = vld [vmem:[#allocation2 + $0x14] sm:$0xf]
    %v53 = vld [vmem:[#allocation2 + $0x18] sm:$0xf]
    %v54 = vld [vmem:[#allocation2 + $0x1c] sm:$0xf]
    %v55 = vld [vmem:[#allocation2 + $0x20] sm:$0xf]
    %v56 = vld [vmem:[#allocation2 + $0x24] sm:$0xf]
    %v57 = vld [vmem:[#allocation2 + $0x28] sm:$0xf]
    %v58 = vld [vmem:[#allocation2 + $0x2c] sm:$0xf]
    %v59 = vld [vmem:[#allocation2 + $0x30] sm:$0xf]
    %v60 = vld [vmem:[#allocation2 + $0x34] sm:$0xf]
    %v61 = vld [vmem:[#allocation2 + $0x38] sm:$0xf]
    %v62 = vld [vmem:[#allocation2 + $0x3c] sm:$0xf]
    %v63 = vld [vmem:[#allocation5] sm:$0xf]
    %v64 = vld [vmem:[#allocation5 + $0x4] sm:$0xf]
    %v65 = vld [vmem:[#allocation5 + $0x8] sm:$0xf]
    %v66 = vld [vmem:[#allocation5 + $0xc] sm:$0xf]
    %v67 = vld [vmem:[#allocation5 + $0x10] sm:$0xf]
    %v68 = vld [vmem:[#allocation5 + $0x14] sm:$0xf]
    %v69 = vld [vmem:[#allocation5 + $0x18] sm:$0xf]
    %v70 = vld [vmem:[#allocation5 + $0x1c] sm:$0xf]
    %v71 = vld [vmem:[#allocation5 + $0x20] sm:$0xf]
    %v72 = vld [vmem:[#allocation5 + $0x24] sm:$0xf]
    %v73 = vld [vmem:[#allocation5 + $0x28] sm:$0xf]
    %v74 = vld [vmem:[#allocation5 + $0x2c] sm:$0xf]
    %v75 = vld [vmem:[#allocation5 + $0x30] sm:$0xf]
    %v76 = vld [vmem:[#allocation5 + $0x34] sm:$0xf]
    %v77 = vld [vmem:[#allocation5 + $0x38] sm:$0xf]
    %v78 = vld [vmem:[#allocation5 + $0x3c] sm:$0xf]
    %v95 = vunpack.c.l.b16 %v47
    %v96 = vunpack.c.l.b16 %v48
    %v97 = vunpack.c.l.b16 %v49
    %v98 = vunpack.c.l.b16 %v50
    %v99 = vunpack.c.l.b16 %v51
    %v100 = vunpack.c.l.b16 %v52
    %v101 = vunpack.c.l.b16 %v53
    %v102 = vunpack.c.l.b16 %v54
    %v103 = vunpack.c.l.b16 %v55
    %v104 = vunpack.c.l.b16 %v56
    %v105 = vunpack.c.l.b16 %v57
    %v106 = vunpack.c.l.b16 %v58
    %v107 = vunpack.c.l.b16 %v59
    %v108 = vunpack.c.l.b16 %v60
    %v109 = vunpack.c.l.b16 %v61
    %v110 = vunpack.c.l.b16 %v62
    %v111 = vpack.c.b16 %v96, %v95
    %v112 = vpack.c.b16 %v98, %v97
    %v113 = vpack.c.b16 %v100, %v99
    %v114 = vpack.c.b16 %v102, %v101
    %v115 = vpack.c.b16 %v104, %v103
    %v116 = vpack.c.b16 %v106, %v105
    %v117 = vpack.c.b16 %v108, %v107
    %v118 = vpack.c.b16 %v110, %v109
    %v143 = vunpack.c.l.b16 %v63
    %v144 = vunpack.c.l.b16 %v64
    %v145 = vunpack.c.l.b16 %v65
    %v146 = vunpack.c.l.b16 %v66
    %v147 = vunpack.c.l.b16 %v67
    %v148 = vunpack.c.l.b16 %v68
    %v149 = vunpack.c.l.b16 %v69
    %v150 = vunpack.c.l.b16 %v70
    %v151 = vunpack.c.l.b16 %v71
    %v152 = vunpack.c.l.b16 %v72
    %v153 = vunpack.c.l.b16 %v73
    %v154 = vunpack.c.l.b16 %v74
    %v155 = vunpack.c.l.b16 %v75
    %v156 = vunpack.c.l.b16 %v76
    %v157 = vunpack.c.l.b16 %v77
    %v158 = vunpack.c.l.b16 %v78
    %v159 = vpack.c.b16 %v144, %v143
    %v160 = vpack.c.b16 %v146, %v145
    %v161 = vpack.c.b16 %v148, %v147
    %v162 = vpack.c.b16 %v150, %v149
    %v163 = vpack.c.b16 %v152, %v151
    %v164 = vpack.c.b16 %v154, %v153
    %v165 = vpack.c.b16 %v156, %v155
    %v166 = vpack.c.b16 %v158, %v157
    %175 = vmatpush.bf16.msra.mxu0 %v166
    %176 = vmatpush.bf16.msra.mxu0 %v165
    %177 = vmatpush.bf16.msra.mxu0 %v164
    %178 = vmatpush.bf16.msra.mxu0 %v163
    %179 = vmatpush.bf16.msra.mxu0 %v162
    %180 = vmatpush.bf16.msra.mxu0 %v161
    %181 = vmatpush.bf16.msra.mxu0 %v160
    %182 = vmatpush.bf16.msra.mxu0 %v159
    %183 = vmatmul.bf16.gmra.mxu0 %v111
    %v184 = vpop.f32.mrf.mxu0
    %v185 = vadd.f32 0.0, %v184
    %v186 = vpop.f32.mrf.mxu0
    %v187 = vadd.f32 0.0, %v186
    %188 = vmatmul.bf16.gmra.mxu0 %v112
    %v189 = vpop.f32.mrf.mxu0
    %v190 = vadd.f32 0.0, %v189
    %v191 = vpop.f32.mrf.mxu0
    %v192 = vadd.f32 0.0, %v191
    %193 = vmatmul.bf16.gmra.mxu0 %v113
    %v194 = vpop.f32.mrf.mxu0
    %v195 = vadd.f32 0.0, %v194
    %v196 = vpop.f32.mrf.mxu0
    %v197 = vadd.f32 0.0, %v196
    %198 = vmatmul.bf16.gmra.mxu0 %v114
    %v199 = vpop.f32.mrf.mxu0
    %v200 = vadd.f32 0.0, %v199
    %v201 = vpop.f32.mrf.mxu0
    %v202 = vadd.f32 0.0, %v201
    %203 = vmatmul.bf16.gmra.mxu0 %v115
    %v204 = vpop.f32.mrf.mxu0
    %v205 = vadd.f32 0.0, %v204
    %v206 = vpop.f32.mrf.mxu0
    %v207 = vadd.f32 0.0, %v206
    %208 = vmatmul.bf16.gmra.mxu0 %v116
    %v209 = vpop.f32.mrf.mxu0
    %v210 = vadd.f32 0.0, %v209
    %v211 = vpop.f32.mrf.mxu0
    %v212 = vadd.f32 0.0, %v211
    %213 = vmatmul.bf16.gmra.mxu0 %v117
    %v214 = vpop.f32.mrf.mxu0
    %v215 = vadd.f32 0.0, %v214
    %v216 = vpop.f32.mrf.mxu0
    %v217 = vadd.f32 0.0, %v216
    %218 = vmatmul.bf16.gmra.mxu0 %v118
    %v219 = vpop.f32.mrf.mxu0
    %v220 = vadd.f32 0.0, %v219
    %v221 = vpop.f32.mrf.mxu0
    %v222 = vadd.f32 0.0, %v221
    %223 = vdwg.mxu0
    %224 = vst [vmem:[#allocation7] sm:$0xff] %v185
    %225 = vst [vmem:[#allocation7 + $0x8] sm:$0xff] %v187
    %226 = vst [vmem:[#allocation7 + $0x10] sm:$0xff] %v190
    %227 = vst [vmem:[#allocation7 + $0x18] sm:$0xff] %v192
    %228 = vst [vmem:[#allocation7 + $0x20] sm:$0xff] %v195
    %229 = vst [vmem:[#allocation7 + $0x28] sm:$0xff] %v197
    %230 = vst [vmem:[#allocation7 + $0x30] sm:$0xff] %v200
    %231 = vst [vmem:[#allocation7 + $0x38] sm:$0xff] %v202
    %232 = vst [vmem:[#allocation7 + $0x40] sm:$0xff] %v205
    %233 = vst [vmem:[#allocation7 + $0x48] sm:$0xff] %v207
    %234 = vst [vmem:[#allocation7 + $0x50] sm:$0xff] %v210
    %235 = vst [vmem:[#allocation7 + $0x58] sm:$0xff] %v212
    %236 = vst [vmem:[#allocation7 + $0x60] sm:$0xff] %v215
    %237 = vst [vmem:[#allocation7 + $0x68] sm:$0xff] %v217
    %238 = vst [vmem:[#allocation7 + $0x70] sm:$0xff] %v220
    %239 = vst [vmem:[#allocation7 + $0x78] sm:$0xff] %v222
    %v240 = vpack.c.bf16 %v185, %v185
    %v241 = vpack.c.bf16 %v187, %v187
    %v242 = vpack.c.bf16 %v190, %v190
    %v243 = vpack.c.bf16 %v192, %v192
    %v244 = vpack.c.bf16 %v195, %v195
    %v245 = vpack.c.bf16 %v197, %v197
    %v246 = vpack.c.bf16 %v200, %v200
    %v247 = vpack.c.bf16 %v202, %v202
    %v248 = vpack.c.bf16 %v205, %v205
    %v249 = vpack.c.bf16 %v207, %v207
    %v250 = vpack.c.bf16 %v210, %v210
    %v251 = vpack.c.bf16 %v212, %v212
    %v252 = vpack.c.bf16 %v215, %v215
    %v253 = vpack.c.bf16 %v217, %v217
    %v254 = vpack.c.bf16 %v220, %v220
    %v255 = vpack.c.bf16 %v222, %v222
    %256 = vst [vmem:[#allocation8] sm:$0xf] %v240
    %257 = vst [vmem:[#allocation8 + $0x4] sm:$0xf] %v241
    %258 = vst [vmem:[#allocation8 + $0x8] sm:$0xf] %v242
    %259 = vst [vmem:[#allocation8 + $0xc] sm:$0xf] %v243
    %260 = vst [vmem:[#allocation8 + $0x10] sm:$0xf] %v244
    %261 = vst [vmem:[#allocation8 + $0x14] sm:$0xf] %v245
    %262 = vst [vmem:[#allocation8 + $0x18] sm:$0xf] %v246
    %263 = vst [vmem:[#allocation8 + $0x1c] sm:$0xf] %v247
    %264 = vst [vmem:[#allocation8 + $0x20] sm:$0xf] %v248
    %265 = vst [vmem:[#allocation8 + $0x24] sm:$0xf] %v249
    %266 = vst [vmem:[#allocation8 + $0x28] sm:$0xf] %v250
    %267 = vst [vmem:[#allocation8 + $0x2c] sm:$0xf] %v251
    %268 = vst [vmem:[#allocation8 + $0x30] sm:$0xf] %v252
    %269 = vst [vmem:[#allocation8 + $0x34] sm:$0xf] %v253
    %270 = vst [vmem:[#allocation8 + $0x38] sm:$0xf] %v254
    %271 = vst [vmem:[#allocation8 + $0x3c] sm:$0xf] %v255
    // Predicated region
    $region18: #{tpu_custom_call.1} parent=1 // pred_check
      _
    $region19: #{tpu_custom_call.1} parent=1 // pred_check_branch
      %273 = sbr.rel (0) target = $region21
    $region20: #{tpu_custom_call.1} parent=1 // pred_region
      %275 = vsyncadd [#allocation4], 0
      %s276 = sshll.u32 [#allocation7], 4
      %s277 = int_to_ptr.vmem [resolvable:$true] %s276
      %s278 = sshll.u32 %s2, 4
      %s279 = int_to_ptr.hbm [resolvable:$true] %s278
      %284 = dma.vmem_to_hbm [thread:$0]  %s277, 2048, %s279, [#allocation4], 128, 128, 8
    $region21: #{tpu_custom_call.1} parent=1 // pred_fallthru
      _
    // Predicated region
    $region22: #{tpu_custom_call.1} parent=1 // pred_check
      _
    $region23: #{tpu_custom_call.1} parent=1 // pred_check_branch
      %286 = sbr.rel (0) target = $region25
    $region24: #{tpu_custom_call.1} parent=1 // pred_region
      %288 = vsyncadd [#allocation9], 0
      %s289 = sshll.u32 [#allocation8], 4
      %s290 = int_to_ptr.vmem [resolvable:$true] %s289
      %s291 = sshll.u32 %s3, 4
      %s292 = int_to_ptr.hbm [resolvable:$true] %s291
      %297 = dma.vmem_to_hbm [thread:$0]  %s290, 1024, %s292, [#allocation9], 64, 64, 4
    $region25: #{tpu_custom_call.1} parent=1 // pred_fallthru
      _
    // Predicated region
    $region26: #{tpu_custom_call.1} parent=1 // pred_check
      _
    $region27: #{tpu_custom_call.1} parent=1 // pred_check_branch
      %299 = sbr.rel (0) target = $region29
    $region28: #{tpu_custom_call.1} parent=1 // pred_region
      %301 = dma.done [#allocation4], 2048
    $region29: #{tpu_custom_call.1} parent=1 // pred_fallthru
      _
    // Predicated region
    $region30: #{tpu_custom_call.1} parent=1 // pred_check
      _
    $region31: #{tpu_custom_call.1} parent=1 // pred_check_branch
      %303 = sbr.rel (0) target = $region33
    $region32: #{tpu_custom_call.1} parent=1 // pred_region
      %305 = dma.done [#allocation9], 1024
    $region33: #{tpu_custom_call.1} parent=1 // pred_fallthru
      _
    %306 = vsyncpa [#allocation3], 1
    %307 = vsyncpa [#allocation6], 1
    %308 = vsyncpa [#allocation4], 1
    %309 = vsyncpa [#allocation9], 1

</llo_original>
